<compile_context>
chip_gen: v7x
topology: tpu7x:2x2x1
jax: 0.10.0
libtpu: 0.0.40
codegen_flags: <defaults>
</compile_context>

<pallas_src>
import functools
import math

import jax
import jax.numpy as jnp
from jax import lax
from jax.experimental import pallas as pl
from jax.experimental.pallas import tpu as pltpu


_BLOCK_BYTES = 4 * 1024 * 1024        # per-stream block budget (bytes, dtype-aware)
_VMEM_LIMIT_BYTES = 56 * 1024 * 1024  # fits v5e/v6e (128 MiB) and v7x (64 MiB/TC)
_MIN_ROW_STEPS = 4                    # keep the DMA pipeline busy / feed 2 TCs


def _round_up(x, m):
    return ((x + m - 1) // m) * m


def _choose_tm(m_rows, tm_cap):
    """Row-block size: VMEM-capped, >= _MIN_ROW_STEPS grid steps when possible,
    preferring an even step count so v7x's two TensorCores split evenly."""
    if m_rows <= 8:
        return m_rows                                   # sub-8: must use full dim
    tm_cap = max(8, min(tm_cap, _round_up(m_rows, 8)))
    steps = max(_MIN_ROW_STEPS, pl.cdiv(m_rows, tm_cap))
    if steps % 2:
        steps += 1                                      # even split across 2 TCs
    tm = min(tm_cap, max(8, _round_up(pl.cdiv(m_rows, steps), 8)))
    actual = pl.cdiv(m_rows, tm)
    if actual > 1 and actual % 2:                       # one nudge toward even
        tm_alt = min(tm_cap, max(8, _round_up(pl.cdiv(m_rows, actual + 1), 8)))
        if pl.cdiv(m_rows, tm_alt) % 2 == 0:
            tm = tm_alt
    return tm


def _combine_kernel(alpha_ref, z_ref, p_ref, zp_ref, o_ref, *,
                    inner_d, groups, upcast):
    """One (TM, TD) tile of  out = z + (alpha*p + 1) * z_prime.

    alpha_ref: SMEM (1,) float32
    z_ref/zp_ref/o_ref: VMEM (TM, TD)
    p_ref: VMEM (TM, groups) float32  -- one gate value per packed token.
    """
    alpha = alpha_ref[0]
    gate_g = alpha * p_ref[...] + 1.0                     # (TM, groups) float32
    tm, tl = z_ref.shape

    if groups == 1:
        gate = gate_g                                     # (TM, 1): lane-broadcasts
    else:
        # Lane index + group compares hoisted to (1, TL): ~TM/8x cheaper than
        # building them at (TM, TL).  Per output vreg only the (groups-1)
        # selects (and their operand broadcasts) remain -- pure VPU work.
        lane = lax.broadcasted_iota(jnp.int32, (1, tl), 1)
        gate = jnp.broadcast_to(gate_g[:, 0:1], (tm, tl))
        for g in range(1, groups):
            gate = jnp.where(lane >= g * inner_d, gate_g[:, g:g + 1], gate)

    if upcast:
        # Gate first, then one stream at a time: keeps at most ~3 f32 tile
        # temporaries live, preserving VMEM headroom on v7x (64 MiB/TC).
        acc = gate * zp_ref[...].astype(jnp.float32)
        acc = z_ref[...].astype(jnp.float32) + acc
        o_ref[...] = acc.astype(o_ref.dtype)
    else:
        # bf16-native math (v6e/v7x VALUs support bf16); gate cast once.
        o_ref[...] = z_ref[...] + gate.astype(o_ref.dtype) * zp_ref[...]


def nested_combine(z, router_probs, z_prime=None, *, alpha=None,
                   upcast_to_f32=True, donate_z=False):
    """Pallas implementation of NestedCombine.forward.

    z:             (B, N, D)
    router_probs:  (B, N) or (B, N, 1)
    z_prime:       (B, N, D) or None
    alpha:         (1,) parameter (defaults to zeros, matching nn.Parameter init)
    upcast_to_f32: compute in f32 (default, matches the f32 reference exactly);
                   False does bf16-native mul/add (minor last-ulp differences).
    donate_z:      alias z's HBM buffer with the output.  This saves capacity
                   (and traffic) ONLY if the caller really donates z via
                   jax.jit(..., donate_argnums=...) and the reshape below stays
                   a bitcast; otherwise XLA inserts a defensive copy.
    """
    if z_prime is None:
        # z_prime == 0.0  =>  output is exactly z (no kernel launch needed).
        return z
    if alpha is None:
        alpha = jnp.zeros((1,), dtype=jnp.float32)

    B, N, D = z.shape
    M = B * N
    out_dtype = z.dtype

    # alpha lives in SMEM as f32; gate math is always f32.
    alpha32 = jnp.asarray(alpha, dtype=jnp.float32).reshape((1,))

    # --- byte-based block budget (bf16 gets 2x the elements of f32).
    itemsize = max(jnp.dtype(z.dtype).itemsize, jnp.dtype(z_prime.dtype).itemsize)
    max_elems = _BLOCK_BYTES // itemsize
    max_lane = max(128, (max_elems // 8) // 128 * 128)

    # --- lane packing: pack `groups` consecutive tokens per stored row so the
    # last dim is a multiple of 128 (unmasked vst).  router_probs stays one
    # scalar per token in HBM; the gate is expanded in-kernel.
    groups = 1
    if D % 128 != 0:
        g = 128 // math.gcd(D, 128)
        if g <= 16 and M % g == 0 and g * D <= max_lane:
            groups = g
    # TODO(synk): when 128/gcd(D,128) > 16 or M % g != 0 the output stays
    # D-wide (masked stores); padding M in JAX would add a full extra HBM copy,
    # which is worse than the masked-store penalty.

    L = groups * D            # stored last dim (multiple of 128 when packed)
    m_rows = M // groups

    z2 = z.reshape(m_rows, L)
    zp2 = z_prime.reshape(m_rows, L)
    probs2 = router_probs.reshape(m_rows, groups).astype(jnp.float32)

    # --- tile sizing + grid shaping.
    td = L if L <= max_lane else max_lane          # full L, or a multiple of 128
    tm_cap = max(8, (max_elems // td) // 8 * 8)
    tm = _choose_tm(m_rows, tm_cap)
    grid = (pl.cdiv(m_rows, tm), pl.cdiv(L, td))

    kernel = functools.partial(_combine_kernel, inner_d=D, groups=groups,
                               upcast=upcast_to_f32)

    io_bytes = (M * D * (jnp.dtype(z.dtype).itemsize
                         + jnp.dtype(z_prime.dtype).itemsize
                         + jnp.dtype(out_dtype).itemsize)
                + M * 4)
    cost = pl.CostEstimate(flops=3 * M * D, transcendentals=0,
                           bytes_accessed=io_bytes)

    out = pl.pallas_call(
        kernel,
        out_shape=jax.ShapeDtypeStruct((m_rows, L), out_dtype),
        grid=grid,
        in_specs=[
            pl.BlockSpec(memory_space=pltpu.MemorySpace.SMEM),    # alpha (1,) f32
            pl.BlockSpec((tm, td), lambda i, j: (i, j)),          # z tile
            pl.BlockSpec((tm, groups), lambda i, j: (i, 0)),      # router probs
            pl.BlockSpec((tm, td), lambda i, j: (i, j)),          # z_prime tile
        ],
        out_specs=pl.BlockSpec((tm, td), lambda i, j: (i, j)),
        compiler_params=pltpu.CompilerParams(
            dimension_semantics=("parallel", "parallel"),
            vmem_limit_bytes=_VMEM_LIMIT_BYTES),
        cost_estimate=cost,
        input_output_aliases=({1: 0} if donate_z else {}),
    )(alpha32, z2, probs2, zp2)

    return out.reshape(B, N, D)


def _reference(z, router_probs, z_prime, alpha):
    if z_prime is None:
        return z
    gate = alpha.astype(jnp.float32)[0] * router_probs.astype(jnp.float32)[..., None] + 1.0
    res = z.astype(jnp.float32) + gate * z_prime.astype(jnp.float32)
    return res.astype(z.dtype)


if __name__ == "__main__":
    key = jax.random.PRNGKey(0)
    k1, k2, k3, k4, k5, k6 = jax.random.split(key, 6)

    alpha = jnp.array([0.5], dtype=jnp.float32)   # non-zero so gating is exercised

    # --- case 1: small hidden dim (D=32) -> lane-packing path (4 tokens/row).
    B, N, D = 2, 8, 32
    z = jax.random.normal(k1, (B, N, D), dtype=jnp.float32)
    zp = jax.random.normal(k2, (B, N, D), dtype=jnp.float32)
    probs = jax.nn.softmax(jax.random.normal(k3, (B, N), dtype=jnp.float32), axis=-1)

    out = jax.block_until_ready(nested_combine(z, probs, zp, alpha=alpha))
    ref = _reference(z, probs, zp, alpha)
    assert out.shape == z.shape and out.dtype == z.dtype
    assert jnp.allclose(out, ref, atol=1e-6, rtol=1e-6)

    # --- case 2: lane-dense hidden dim (D=256) -> direct path, multi-step grid.
    B2, N2, D2 = 2, 8, 256
    z2 = jax.random.normal(k4, (B2, N2, D2), dtype=jnp.float32)
    zp2 = jax.random.normal(k5, (B2, N2, D2), dtype=jnp.float32)
    probs2 = jax.nn.softmax(jax.random.normal(k6, (B2, N2), dtype=jnp.float32), axis=-1)

    out2 = jax.block_until_ready(nested_combine(z2, probs2, zp2, alpha=alpha))
    ref2 = _reference(z2, probs2, zp2, alpha)
    assert out2.shape == z2.shape and out2.dtype == z2.dtype
    assert jnp.allclose(out2, ref2, atol=1e-6, rtol=1e-6)

    # --- case 3: bf16 inputs, default f32-accumulate path.
    z3 = z2.astype(jnp.bfloat16)
    zp3 = zp2.astype(jnp.bfloat16)
    out3 = jax.block_until_ready(nested_combine(z3, probs2, zp3, alpha=alpha))
    ref3 = _reference(z3, probs2, zp3, alpha)
    assert out3.dtype == jnp.bfloat16
    assert jnp.allclose(out3.astype(jnp.float32), ref3.astype(jnp.float32),
                        atol=5e-2, rtol=5e-2)

    # --- case 3b: bf16-native math path (upcast_to_f32=False), looser tolerance.
    out3b = jax.block_until_ready(
        nested_combine(z3, probs2, zp3, alpha=alpha, upcast_to_f32=False))
    assert out3b.dtype == jnp.bfloat16
    assert jnp.allclose(out3b.astype(jnp.float32), ref3.astype(jnp.float32),
                        atol=5e-2, rtol=5e-2)

    # --- case 4: z_prime=None fast path -> result must equal z exactly.
    out_none = jax.block_until_ready(nested_combine(z, probs, None, alpha=alpha))
    assert jnp.array_equal(out_none, z)

    print("KERNEL_OK")
</pallas_src>

<mosaic_0001>
module attributes {stable_mosaic.version = 11 : i64} {
  func.func @_combine_kernel(%arg0: i32, %arg1: i32, %arg2: memref<1xf32, #tpu.memory_space<smem>>, %arg3: memref<4x128xf32, #tpu.memory_space<vmem>>, %arg4: memref<4x4xf32, #tpu.memory_space<vmem>>, %arg5: memref<4x128xf32, #tpu.memory_space<vmem>>, %arg6: memref<4x128xf32, #tpu.memory_space<vmem>>) attributes {dimension_semantics = [#tpu.dimension_semantics<parallel>, #tpu.dimension_semantics<parallel>], iteration_bounds = array<i64: 1, 1>, scalar_prefetch = 0 : i64, scratch_operands = 0 : i64, tpu.core_type = #tpu.core_type<tc>, window_params = [{transform_indices = @transform_0, window_bounds = array<i64: 1>}, {transform_indices = @transform_1, window_bounds = array<i64: 4, 128>}, {transform_indices = @transform_2, window_bounds = array<i64: 4, 4>}, {transform_indices = @transform_3, window_bounds = array<i64: 4, 128>}, {transform_indices = @transform_4, window_bounds = array<i64: 4, 128>}]} {
    %c0 = arith.constant 0 : index
    %0 = memref.load %arg2[%c0] : memref<1xf32, #tpu.memory_space<smem>>
    %c0_0 = arith.constant 0 : index
    %c0_1 = arith.constant 0 : index
    %1 = vector.load %arg4[%c0_0, %c0_1] : memref<4x4xf32, #tpu.memory_space<vmem>>, vector<4x4xf32>
    %2 = vector.broadcast %0 : f32 to vector<4x4xf32>
    %3 = arith.mulf %2, %1 : vector<4x4xf32>
    %cst = arith.constant 1.000000e+00 : f32
    %4 = vector.broadcast %cst : f32 to vector<4x4xf32>
    %5 = arith.addf %3, %4 : vector<4x4xf32>
    %6 = tpu.iota {dimensions = array<i32: 1>} : vector<1x128xi32>
    %7 = vector.extract_strided_slice %5 {offsets = [0, 0], sizes = [4, 1], strides = [1, 1]} : vector<4x4xf32> to vector<4x1xf32>
    %8 = vector.shape_cast %7 : vector<4x1xf32> to vector<4x1xf32>
    %9 = vector.broadcast %8 : vector<4x1xf32> to vector<4x128xf32>
    %c32_i32 = arith.constant 32 : i32
    %10 = vector.broadcast %c32_i32 : i32 to vector<1x128xi32>
    %11 = arith.cmpi sge, %6, %10 : vector<1x128xi32>
    %12 = vector.extract_strided_slice %5 {offsets = [0, 1], sizes = [4, 1], strides = [1, 1]} : vector<4x4xf32> to vector<4x1xf32>
    %13 = vector.shape_cast %11 : vector<1x128xi1> to vector<1x128xi1>
    %14 = vector.broadcast %13 : vector<1x128xi1> to vector<4x128xi1>
    %15 = vector.shape_cast %12 : vector<4x1xf32> to vector<4x1xf32>
    %16 = vector.broadcast %15 : vector<4x1xf32> to vector<4x128xf32>
    %17 = arith.select %14, %16, %9 : vector<4x128xi1>, vector<4x128xf32>
    %c64_i32 = arith.constant 64 : i32
    %18 = vector.broadcast %c64_i32 : i32 to vector<1x128xi32>
    %19 = arith.cmpi sge, %6, %18 : vector<1x128xi32>
    %20 = vector.extract_strided_slice %5 {offsets = [0, 2], sizes = [4, 1], strides = [1, 1]} : vector<4x4xf32> to vector<4x1xf32>
    %21 = vector.shape_cast %19 : vector<1x128xi1> to vector<1x128xi1>
    %22 = vector.broadcast %21 : vector<1x128xi1> to vector<4x128xi1>
    %23 = vector.shape_cast %20 : vector<4x1xf32> to vector<4x1xf32>
    %24 = vector.broadcast %23 : vector<4x1xf32> to vector<4x128xf32>
    %25 = arith.select %22, %24, %17 : vector<4x128xi1>, vector<4x128xf32>
    %c96_i32 = arith.constant 96 : i32
    %26 = vector.broadcast %c96_i32 : i32 to vector<1x128xi32>
    %27 = arith.cmpi sge, %6, %26 : vector<1x128xi32>
    %28 = vector.extract_strided_slice %5 {offsets = [0, 3], sizes = [4, 1], strides = [1, 1]} : vector<4x4xf32> to vector<4x1xf32>
    %29 = vector.shape_cast %27 : vector<1x128xi1> to vector<1x128xi1>
    %30 = vector.broadcast %29 : vector<1x128xi1> to vector<4x128xi1>
    %31 = vector.shape_cast %28 : vector<4x1xf32> to vector<4x1xf32>
    %32 = vector.broadcast %31 : vector<4x1xf32> to vector<4x128xf32>
    %33 = arith.select %30, %32, %25 : vector<4x128xi1>, vector<4x128xf32>
    %c0_2 = arith.constant 0 : index
    %c0_3 = arith.constant 0 : index
    %34 = vector.load %arg5[%c0_2, %c0_3] : memref<4x128xf32, #tpu.memory_space<vmem>>, vector<4x128xf32>
    %35 = arith.mulf %33, %34 : vector<4x128xf32>
    %c0_4 = arith.constant 0 : index
    %c0_5 = arith.constant 0 : index
    %36 = vector.load %arg3[%c0_4, %c0_5] : memref<4x128xf32, #tpu.memory_space<vmem>>, vector<4x128xf32>
    %37 = arith.addf %36, %35 : vector<4x128xf32>
    %c0_6 = arith.constant 0 : index
    %c0_7 = arith.constant 0 : index
    %38 = vector.load %arg6[%c0_6, %c0_7] : memref<4x128xf32, #tpu.memory_space<vmem>>, vector<4x128xf32>
    tpu.vector_store %arg6[%c0_6, %c0_7], %37 {strides = array<i32>} : memref<4x128xf32, #tpu.memory_space<vmem>>, vector<4x128xf32>,
    return
  }
  func.func @transform_0(%arg0: i32, %arg1: i32) -> i32 {
    %c0_i32 = arith.constant 0 : i32
    %c0_i32_0 = arith.constant 0 : i32
    return %c0_i32 : i32
  }
  func.func @transform_1(%arg0: i32, %arg1: i32) -> (i32, i32) {
    %c0_i32 = arith.constant 0 : i32
    return %arg0, %arg1 : i32, i32
  }
  func.func @transform_2(%arg0: i32, %arg1: i32) -> (i32, i32) {
    %c0_i32 = arith.constant 0 : i32
    %c0_i32_0 = arith.constant 0 : i32
    return %arg0, %c0_i32 : i32, i32
  }
  func.func @transform_3(%arg0: i32, %arg1: i32) -> (i32, i32) {
    %c0_i32 = arith.constant 0 : i32
    return %arg0, %arg1 : i32, i32
  }
  func.func @transform_4(%arg0: i32, %arg1: i32) -> (i32, i32) {
    %c0_i32 = arith.constant 0 : i32
    return %arg0, %arg1 : i32, i32
  }
}

</mosaic_0001>

<llo_original>
// kernel: tpu_custom_call.1
$region0: #{tpu_custom_call.1}
  #allocation0 [shape = 'u32[]', space=smem, size = 0x4, offset = 0x4, fixed_abs, tag = 'smem constant byte address 0x4 - core index']
  #allocation1 [shape = 'u32[144,128]{1,0:T(1,128)}', space=vmem, size = 0x12000, scoped, tag = 'internal scratch']
  #allocation2 [shape = 'f32[1]{0:T(128)S(6)}', space=smem, size = 0x200, scoped, tag = 'scoped memory for tpu_custom_call.1']
  %s0 = inlined_call_operand.<no memory space> [shape: f32[1], index: 0, kind: input, shape index: {}]
  %s1 = inlined_call_operand.hbm [shape: f32[4,128], index: 1, kind: input, shape index: {}]
  %s2 = inlined_call_operand.vmem [shape: f32[4,4], index: 2, kind: input, shape index: {}]
  %s3 = inlined_call_operand.vmem [shape: f32[4,128], index: 3, kind: input, shape index: {}]
  %s4 = inlined_call_operand.hbm [shape: f32[4,128], index: 4, kind: output, shape index: {}]
  %s5 = sld [smem:[#allocation0]]
  $region30: #{tpu_custom_call.1} parent=0
    _
  %s7 = ssub.s32 1, %s5
  %s8 = scalar_select 0, %s7, %s5
  %9 = sst [smem:[#allocation2]] %s0
  $region1: #{tpu_custom_call.1} parent=0
    #allocation3 [shape = 'u8[2048]{0}', space=vmem, size = 0x800, scoped, tag = 'input window, operand 1, single buffered']
    #allocation4 [shape = 's32[1]{0}', space=sflag, size = 0x4, scoped, tag = 'scoped memory for tpu_custom_call.1']
    #allocation5 [shape = 's32[1]{0}', space=sflag, size = 0x4, scoped, tag = 'scoped memory for tpu_custom_call.1']
    #allocation6 [shape = 'u8[2048]{0}', space=vmem, size = 0x800, scoped, tag = 'output window, operand 0, single buffered']
    %10 = vsyncpa [#allocation4], 0
    %11 = vsyncpa [#allocation5], 0
    // Predicated region
    $region2: #{tpu_custom_call.1} parent=1 // pred_check
      _
    $region3: #{tpu_custom_call.1} parent=1 // pred_check_branch
      %13 = sbr.rel (0) target = $region5
    $region4: #{tpu_custom_call.1} parent=1 // pred_region
      _
    $region5: #{tpu_custom_call.1} parent=1 // pred_fallthru
      _
    // Predicated region
    $region6: #{tpu_custom_call.1} parent=1 // pred_check
      _
    $region7: #{tpu_custom_call.1} parent=1 // pred_check_branch
      %15 = sbr.rel (0) target = $region9
    $region8: #{tpu_custom_call.1} parent=1 // pred_region
      %s17 = ssub.s32 64, 64
      %18 = vsyncadd [#allocation4], %s17
      %s20 = sshll.u32 [#allocation3], 4
      %s21 = int_to_ptr.vmem [resolvable:$true] %s20
      %23 = dma.hbm_to_vmem [thread:$0]  %s1, 64, %s21, [#allocation4]
    $region9: #{tpu_custom_call.1} parent=1 // pred_fallthru
      _
    // Predicated region
    $region10: #{tpu_custom_call.1} parent=1 // pred_check
      _
    $region11: #{tpu_custom_call.1} parent=1 // pred_check_branch
      %25 = sbr.rel (0) target = $region13
    $region12: #{tpu_custom_call.1} parent=1 // pred_region
      _
    $region13: #{tpu_custom_call.1} parent=1 // pred_fallthru
      _
    // Predicated region
    $region14: #{tpu_custom_call.1} parent=1 // pred_check
      _
    $region15: #{tpu_custom_call.1} parent=1 // pred_check_branch
      %27 = sbr.rel (0) target = $region17
    $region16: #{tpu_custom_call.1} parent=1 // pred_region
      _
    $region17: #{tpu_custom_call.1} parent=1 // pred_fallthru
      _
    // Predicated region
    $region18: #{tpu_custom_call.1} parent=1 // pred_check
      _
    $region19: #{tpu_custom_call.1} parent=1 // pred_check_branch
      %29 = sbr.rel (0) target = $region21
    $region20: #{tpu_custom_call.1} parent=1 // pred_region
      %30 = dma.done [#allocation4], 64
    $region21: #{tpu_custom_call.1} parent=1 // pred_fallthru
      _
    %s31 = sld [smem:[#allocation2]]
    %v32 = vld [vmem:[%s2] sm:$0xf]
    %v33 = vstv %s31
    %v34 = vmul.f32 %v33, %v32
    %v35 = vadd.f32 %v34, 1.0
    %v36 = vlaneseq
    %v37 = vand.u32 %v36, 127
    %39 = vset.pattern.permute.xlu0 0
    %40 = vperm.xlu0 %39, %v35
    %v41 = vpop.permute.xlu0 %40
    %vm43 = vcmp.ge.s32.totalorder %v37, 32
    %v44 = vsel %vm43, 1, 0
    %vm45 = vcmp.eq.s32.totalorder %v44, 1
    %46 = vset.pattern.permute.xlu0 1
    %47 = vperm.xlu0 %46, %v35
    %v48 = vpop.permute.xlu0 %47
    %v50 = vsel %vm45, %v48, %v41
    %vm51 = vcmp.ge.s32.totalorder %v37, 64
    %v52 = vsel %vm51, 1, 0
    %vm53 = vcmp.eq.s32.totalorder %v52, 1
    %54 = vset.pattern.permute.xlu0 2
    %55 = vperm.xlu0 %54, %v35
    %v56 = vpop.permute.xlu0 %55
    %v58 = vsel %vm53, %v56, %v50
    %vm59 = vcmp.ge.s32.totalorder %v37, 96
    %v60 = vsel %vm59, 1, 0
    %vm61 = vcmp.eq.s32.totalorder %v60, 1
    %62 = vset.pattern.permute.xlu0 3
    %63 = vperm.xlu0 %62, %v35
    %v64 = vpop.permute.xlu0 %63
    %v66 = vsel %vm61, %v64, %v58
    %v67 = vld [vmem:[%s3] sm:$0xf]
    %v68 = vmul.f32 %v66, %v67
    %v69 = vld [vmem:[#allocation3] sm:$0xf]
    %v70 = vadd.f32 %v69, %v68
    %71 = vst [vmem:[#allocation6] sm:$0xf] %v70
    // Predicated region
    $region22: #{tpu_custom_call.1} parent=1 // pred_check
      _
    $region23: #{tpu_custom_call.1} parent=1 // pred_check_branch
      %73 = sbr.rel (0) target = $region25
    $region24: #{tpu_custom_call.1} parent=1 // pred_region
      %s75 = ssub.s32 64, 64
      %76 = vsyncadd [#allocation5], %s75
      %s78 = sshll.u32 [#allocation6], 4
      %s79 = int_to_ptr.vmem [resolvable:$true] %s78
      %81 = dma.vmem_to_hbm [thread:$0]  %s79, 64, %s4, [#allocation5]
    $region25: #{tpu_custom_call.1} parent=1 // pred_fallthru
      _
    // Predicated region
    $region26: #{tpu_custom_call.1} parent=1 // pred_check
      _
    $region27: #{tpu_custom_call.1} parent=1 // pred_check_branch
      %83 = sbr.rel (0) target = $region29
    $region28: #{tpu_custom_call.1} parent=1 // pred_region
      %84 = dma.done [#allocation5], 64
    $region29: #{tpu_custom_call.1} parent=1 // pred_fallthru
      _
    %85 = vsyncpa [#allocation4], 1
    %86 = vsyncpa [#allocation5], 1

</llo_original>
